<compile_context>
chip_gen: v5e
topology: v5e:2x2
jax: 0.10.0
libtpu: 0.0.40
codegen_flags: <defaults>
</compile_context>

<pallas_src>
import functools

import jax
import jax.numpy as jnp
from jax.experimental import pallas as pl
from jax.experimental.pallas import tpu as pltpu


def _round_up(x, m):
    return ((x + m - 1) // m) * m


def _vmem_budget_bytes():
    """Per-TensorCore VMEM budget = physical capacity minus headroom."""
    try:
        phys = pltpu.get_tpu_info().vmem_capacity_bytes
    except Exception:
        phys = 64 << 20  # conservative default (v7x-sized)
    # v5e/v6e: 128 MiB -> 96 MiB budget; v7x: 64 MiB -> 48 MiB budget.
    return max(phys - max(16 << 20, phys // 4), 16 << 20)


def mlp_kernel(x_ref, w1_ref, b1_ref, w2_ref, b2_ref, o_ref):
    # x_ref : (TILE_B, D_in) f32      w1_ref: (D_in, H)  bf16
    # b1_ref: (1, H) f32              w2_ref: (H, N_out) bf16
    # b2_ref: (1, N_out) f32          o_ref : (TILE_B, N_out)
    x = x_ref[...].astype(jnp.bfloat16)  # cast in VMEM, not in a wrapper HBM pass

    # fc1 + ReLU (bf16 MXU inputs, f32 accumulation / epilogue)
    h = jnp.dot(x, w1_ref[...], preferred_element_type=jnp.float32)
    h = jnp.maximum(h + b1_ref[...], 0.0)

    # fc2
    logits = jnp.dot(h.astype(w2_ref.dtype), w2_ref[...],
                     preferred_element_type=jnp.float32)
    logits = logits + b2_ref[...]

    # Numerically-stable, *exact* softmax over the feature axis (torch dim=1).
    m = jnp.max(logits, axis=-1, keepdims=True)
    e = jnp.exp(logits - m)
    denom = jnp.sum(e, axis=-1, keepdims=True)
    o_ref[...] = (e / denom).astype(o_ref.dtype)


def mlp_forward(x, w1, b1, w2, b2, *, tile_b=1024, out_dtype=jnp.float32):
    """x: (B, D_in) f32; w1: (D_in, H); b1: (H,)/(1,H); w2: (H, N); b2: (N,)/(1,N)."""
    batch, d_in = x.shape
    hidden = w1.shape[1]
    n_out = w2.shape[1]

    # Weights live resident in VMEM as bf16; biases stay f32.
    w1 = w1.astype(jnp.bfloat16)
    w2 = w2.astype(jnp.bfloat16)
    b1 = b1.reshape(1, hidden).astype(jnp.float32)
    b2 = b2.reshape(1, n_out).astype(jnp.float32)

    budget = _vmem_budget_bytes()
    out_bytes = jnp.dtype(out_dtype).itemsize

    def vmem_est(tb):
        return (2 * tb * d_in * 4                        # x tiles (f32, 2 buffers)
                + 2 * tb * n_out * out_bytes             # out tiles (2 buffers)
                + (d_in * hidden + hidden * n_out) * 2   # resident bf16 weights (1 buffer)
                + (hidden + n_out) * 4                   # resident biases
                + 3 * tb * (hidden + n_out) * 4)         # live f32 intermediates

    # Sublane-aligned batch tile that fits the VMEM budget.
    tile_b = max(8, _round_up(min(tile_b, batch), 8))
    while tile_b > 8 and vmem_est(tile_b) > budget:
        tile_b = max(8, _round_up(tile_b // 2, 8))

    # Re-quantize so the last tile isn't mostly padding, and give the
    # "parallel" batch axis at least 2 steps (v7x megacore) when batch allows.
    num_tiles = pl.cdiv(batch, tile_b)
    if num_tiles < 2 and batch >= 16:
        num_tiles = 2
    tile_b = _round_up(pl.cdiv(batch, num_tiles), 8)
    num_tiles = pl.cdiv(batch, tile_b)
    batch_p = num_tiles * tile_b

    if batch_p != batch:  # pad rows only when the batch doesn't quantize
        x = jnp.pad(x, ((0, batch_p - batch), (0, 0)))

    vmem_limit = int(min(budget, max(32 << 20, vmem_est(tile_b) * 5 // 4)))

    resident = dict(pipeline_mode=pl.Buffered(1))  # constant index_map -> 1 buffer
    out_p = pl.pallas_call(
        mlp_kernel,
        out_shape=jax.ShapeDtypeStruct((batch_p, n_out), out_dtype),
        grid=(num_tiles,),
        in_specs=[
            pl.BlockSpec((tile_b, d_in), lambda i: (i, 0)),              # x: streamed
            pl.BlockSpec((d_in, hidden), lambda i: (0, 0), **resident),  # w1: resident
            pl.BlockSpec((1, hidden), lambda i: (0, 0), **resident),     # b1: resident
            pl.BlockSpec((hidden, n_out), lambda i: (0, 0), **resident), # w2: resident
            pl.BlockSpec((1, n_out), lambda i: (0, 0), **resident),      # b2: resident
        ],
        out_specs=pl.BlockSpec((tile_b, n_out), lambda i: (i, 0)),
        compiler_params=pltpu.CompilerParams(
            dimension_semantics=("parallel",),
            vmem_limit_bytes=vmem_limit,
        ),
    )(x, w1, b1, w2, b2)

    return out_p if batch_p == batch else out_p[:batch]


def init_params(key, input_len, n_output, num_neuron=128):
    # Deterministic init mimicking nn.Linear default (uniform +/- 1/sqrt(fan_in)).
    k1, k2, k3, k4 = jax.random.split(key, 4)
    bound1 = 1.0 / (input_len ** 0.5)
    bound2 = 1.0 / (num_neuron ** 0.5)
    # Stored as (in, out) == transpose of PyTorch's (out, in) weight layout.
    w1 = jax.random.uniform(k1, (input_len, num_neuron), jnp.float32, -bound1, bound1)
    b1 = jax.random.uniform(k2, (1, num_neuron), jnp.float32, -bound1, bound1)
    w2 = jax.random.uniform(k3, (num_neuron, n_output), jnp.float32, -bound2, bound2)
    b2 = jax.random.uniform(k4, (1, n_output), jnp.float32, -bound2, bound2)
    return w1, b1, w2, b2


if __name__ == "__main__":
    key = jax.random.PRNGKey(0)
    kx, kp = jax.random.split(key)

    batch, input_len, n_output = 8, 32, 10
    x = jax.random.normal(kx, (batch, input_len), jnp.float32)
    w1, b1, w2, b2 = init_params(kp, input_len, n_output)

    out = mlp_forward(x, w1, b1, w2, b2)
    out = jax.block_until_ready(out)

    # shape and exact-softmax sanity: rows sum to 1
    assert out.shape == (batch, n_output)
    row_sums = jnp.sum(out, axis=1)
    assert jnp.allclose(row_sums, jnp.ones((batch,)), atol=1e-3), row_sums

    # close to a pure-JAX f32 reference (loose tol: bf16 matmul inputs)
    h_ref = jnp.maximum(x @ w1 + b1, 0.0)
    ref = jax.nn.softmax(h_ref @ w2 + b2, axis=1)
    assert jnp.allclose(out, ref, atol=3e-2), float(jnp.max(jnp.abs(out - ref)))

    print("KERNEL_OK")
</pallas_src>

<mosaic_0001>
module attributes {stable_mosaic.version = 11 : i64} {
  func.func @mlp_kernel(%arg0: i32, %arg1: memref<8x32xf32, #tpu.memory_space<vmem>>, %arg2: memref<32x128xbf16, #tpu.memory_space<vmem>>, %arg3: memref<1x128xf32, #tpu.memory_space<vmem>>, %arg4: memref<128x10xbf16, #tpu.memory_space<vmem>>, %arg5: memref<1x10xf32, #tpu.memory_space<vmem>>, %arg6: memref<8x10xf32, #tpu.memory_space<vmem>>) attributes {dimension_semantics = [#tpu.dimension_semantics<parallel>], iteration_bounds = array<i64: 1>, scalar_prefetch = 0 : i64, scratch_operands = 0 : i64, tpu.core_type = #tpu.core_type<tc>, window_params = [{transform_indices = @transform_0, window_bounds = array<i64: 8, 32>}, {pipeline_mode = #tpu.pipeline_mode<synchronous>, transform_indices = @transform_1, window_bounds = array<i64: 32, 128>}, {pipeline_mode = #tpu.pipeline_mode<synchronous>, transform_indices = @transform_2, window_bounds = array<i64: 1, 128>}, {pipeline_mode = #tpu.pipeline_mode<synchronous>, transform_indices = @transform_3, window_bounds = array<i64: 128, 10>}, {pipeline_mode = #tpu.pipeline_mode<synchronous>, transform_indices = @transform_4, window_bounds = array<i64: 1, 10>}, {transform_indices = @transform_5, window_bounds = array<i64: 8, 10>}]} {
    %c0 = arith.constant 0 : index
    %c0_0 = arith.constant 0 : index
    %0 = vector.load %arg1[%c0, %c0_0] : memref<8x32xf32, #tpu.memory_space<vmem>>, vector<8x32xf32>
    %1 = arith.truncf %0 : vector<8x32xf32> to vector<8x32xbf16>
    %c0_1 = arith.constant 0 : index
    %c0_2 = arith.constant 0 : index
    %2 = vector.load %arg2[%c0_1, %c0_2] : memref<32x128xbf16, #tpu.memory_space<vmem>>, vector<32x128xbf16>
    %cst = arith.constant dense<0.000000e+00> : vector<8x128xf32>
    %3 = tpu.matmul %1, %2, %cst {dimension_numbers = #tpu.dot_dimension_numbers<[1], [0], [0], [1], [0, 0, 1, 1], [], []>} : vector<8x32xbf16>, vector<32x128xbf16>, vector<8x128xf32> -> vector<8x128xf32>
    %c0_3 = arith.constant 0 : index
    %c0_4 = arith.constant 0 : index
    %4 = vector.load %arg3[%c0_3, %c0_4] : memref<1x128xf32, #tpu.memory_space<vmem>>, vector<1x128xf32>
    %5 = vector.broadcast %4 : vector<1x128xf32> to vector<8x128xf32>
    %6 = arith.addf %3, %5 : vector<8x128xf32>
    %cst_5 = arith.constant 0.000000e+00 : f32
    %7 = vector.broadcast %cst_5 : f32 to vector<8x128xf32>
    %8 = arith.maximumf %6, %7 : vector<8x128xf32>
    %9 = arith.truncf %8 : vector<8x128xf32> to vector<8x128xbf16>
    %c0_6 = arith.constant 0 : index
    %c0_7 = arith.constant 0 : index
    %10 = vector.load %arg4[%c0_6, %c0_7] : memref<128x10xbf16, #tpu.memory_space<vmem>>, vector<128x10xbf16>
    %cst_8 = arith.constant dense<0.000000e+00> : vector<8x10xf32>
    %11 = tpu.matmul %9, %10, %cst_8 {dimension_numbers = #tpu.dot_dimension_numbers<[1], [0], [0], [1], [0, 0, 1, 1], [], []>} : vector<8x128xbf16>, vector<128x10xbf16>, vector<8x10xf32> -> vector<8x10xf32>
    %c0_9 = arith.constant 0 : index
    %c0_10 = arith.constant 0 : index
    %12 = vector.load %arg5[%c0_9, %c0_10] : memref<1x10xf32, #tpu.memory_space<vmem>>, vector<1x10xf32>
    %13 = vector.broadcast %12 : vector<1x10xf32> to vector<8x10xf32>
    %14 = arith.addf %11, %13 : vector<8x10xf32>
    %cst_11 = arith.constant dense<0xFF800000> : vector<8xf32>
    %15 = vector.multi_reduction <maximumf>, %14, %cst_11 [1] : vector<8x10xf32> to vector<8xf32>
    %16 = vector.shape_cast %15 : vector<8xf32> to vector<8x1xf32>
    %17 = vector.broadcast %16 : vector<8x1xf32> to vector<8x10xf32>
    %18 = arith.subf %14, %17 : vector<8x10xf32>
    %19 = math.exp %18 : vector<8x10xf32>
    %cst_12 = arith.constant dense<0.000000e+00> : vector<8xf32>
    %20 = vector.multi_reduction <add>, %19, %cst_12 [1] : vector<8x10xf32> to vector<8xf32>
    %21 = vector.shape_cast %20 : vector<8xf32> to vector<8x1xf32>
    %22 = vector.broadcast %21 : vector<8x1xf32> to vector<8x10xf32>
    %23 = arith.divf %19, %22 : vector<8x10xf32>
    %c0_13 = arith.constant 0 : index
    %c0_14 = arith.constant 0 : index
    %24 = vector.load %arg6[%c0_13, %c0_14] : memref<8x10xf32, #tpu.memory_space<vmem>>, vector<8x10xf32>
    tpu.vector_store %arg6[%c0_13, %c0_14], %23 {strides = array<i32>} : memref<8x10xf32, #tpu.memory_space<vmem>>, vector<8x10xf32>,
    return
  }
  func.func @transform_0(%arg0: i32) -> (i32, i32) {
    %c0_i32 = arith.constant 0 : i32
    %c0_i32_0 = arith.constant 0 : i32
    return %arg0, %c0_i32 : i32, i32
  }
  func.func @transform_1(%arg0: i32) -> (i32, i32) {
    %c0_i32 = arith.constant 0 : i32
    %c0_i32_0 = arith.constant 0 : i32
    %c0_i32_1 = arith.constant 0 : i32
    return %c0_i32, %c0_i32_0 : i32, i32
  }
  func.func @transform_2(%arg0: i32) -> (i32, i32) {
    %c0_i32 = arith.constant 0 : i32
    %c0_i32_0 = arith.constant 0 : i32
    %c0_i32_1 = arith.constant 0 : i32
    return %c0_i32, %c0_i32_0 : i32, i32
  }
  func.func @transform_3(%arg0: i32) -> (i32, i32) {
    %c0_i32 = arith.constant 0 : i32
    %c0_i32_0 = arith.constant 0 : i32
    %c0_i32_1 = arith.constant 0 : i32
    return %c0_i32, %c0_i32_0 : i32, i32
  }
  func.func @transform_4(%arg0: i32) -> (i32, i32) {
    %c0_i32 = arith.constant 0 : i32
    %c0_i32_0 = arith.constant 0 : i32
    %c0_i32_1 = arith.constant 0 : i32
    return %c0_i32, %c0_i32_0 : i32, i32
  }
  func.func @transform_5(%arg0: i32) -> (i32, i32) {
    %c0_i32 = arith.constant 0 : i32
    %c0_i32_0 = arith.constant 0 : i32
    return %arg0, %c0_i32 : i32, i32
  }
}

</mosaic_0001>

<llo_original>
// kernel: tpu_custom_call.1
$region0: #{tpu_custom_call.1}
  #allocation0 [shape = 'u32[]', space=smem, size = 0x4, offset = 0x4, fixed_abs, tag = 'smem constant byte address 0x4 - core index']
  #allocation1 [shape = 'u32[72,128]{1,0:T(1,128)}', space=vmem, size = 0x9000, scoped, tag = 'internal scratch']
  %s0 = inlined_call_operand.vmem [shape: f32[8,32], index: 0, kind: input, shape index: {}]
  %s1 = inlined_call_operand.vmem [shape: bf16[32,128], index: 1, kind: input, shape index: {}]
  %s2 = inlined_call_operand.vmem [shape: f32[1,128], index: 2, kind: input, shape index: {}]
  %s3 = inlined_call_operand.vmem [shape: bf16[128,10], index: 3, kind: input, shape index: {}]
  %s4 = inlined_call_operand.vmem [shape: f32[1,10], index: 4, kind: input, shape index: {}]
  %s5 = inlined_call_operand.hbm [shape: f32[8,10], index: 5, kind: output, shape index: {}]
  %s6 = sld [smem:[#allocation0]]
  $region30: #{tpu_custom_call.1} parent=0
    _
  %s8 = ssub.s32 1, %s6
  %s9 = scalar_select 0, %s8, %s6
  $region1: #{tpu_custom_call.1} parent=0
    #allocation2 [shape = 'u8[4096]{0}', space=vmem, size = 0x1000, scoped, tag = 'output window, operand 0, single buffered']
    #allocation3 [shape = 's32[1]{0}', space=sflag, size = 0x4, scoped, tag = 'scoped memory for tpu_custom_call.1']
    %10 = vsyncpa [#allocation3], 0
    // Predicated region
    $region2: #{tpu_custom_call.1} parent=1 // pred_check
      _
    $region3: #{tpu_custom_call.1} parent=1 // pred_check_branch
      %12 = sbr.rel (0) target = $region5
    $region4: #{tpu_custom_call.1} parent=1 // pred_region
      _
    $region5: #{tpu_custom_call.1} parent=1 // pred_fallthru
      _
    // Predicated region
    $region6: #{tpu_custom_call.1} parent=1 // pred_check
      _
    $region7: #{tpu_custom_call.1} parent=1 // pred_check_branch
      %14 = sbr.rel (0) target = $region9
    $region8: #{tpu_custom_call.1} parent=1 // pred_region
      _
    $region9: #{tpu_custom_call.1} parent=1 // pred_fallthru
      _
    // Predicated region
    $region10: #{tpu_custom_call.1} parent=1 // pred_check
      _
    $region11: #{tpu_custom_call.1} parent=1 // pred_check_branch
      %16 = sbr.rel (0) target = $region13
    $region12: #{tpu_custom_call.1} parent=1 // pred_region
      _
    $region13: #{tpu_custom_call.1} parent=1 // pred_fallthru
      _
    // Predicated region
    $region14: #{tpu_custom_call.1} parent=1 // pred_check
      _
    $region15: #{tpu_custom_call.1} parent=1 // pred_check_branch
      %18 = sbr.rel (0) target = $region17
    $region16: #{tpu_custom_call.1} parent=1 // pred_region
      _
    $region17: #{tpu_custom_call.1} parent=1 // pred_fallthru
      _
    // Predicated region
    $region18: #{tpu_custom_call.1} parent=1 // pred_check
      _
    $region19: #{tpu_custom_call.1} parent=1 // pred_check_branch
      %20 = sbr.rel (0) target = $region21
    $region20: #{tpu_custom_call.1} parent=1 // pred_region
      _
    $region21: #{tpu_custom_call.1} parent=1 // pred_fallthru
      _
    %v22 = vld [vmem:[%s0] sm:$0xff]
    %v23 = vpack.c.bf16 %v22, %v22
    %v24 = vld [vmem:[%s1] sm:$0xf]
    %v25 = vld [vmem:[%s1 + $0x4] sm:$0xf]
    %v26 = vld [vmem:[%s1 + $0x8] sm:$0xf]
    %v27 = vld [vmem:[%s1 + $0xc] sm:$0xf]
    %v28 = vld [vmem:[%s2] sm:$0x1]
    %v30 = vperm.slane %v28, 0
    %v36 = vunpack.c.l.b16 %v24
    %v37 = vunpack.c.l.b16 %v25
    %v38 = vunpack.c.l.b16 %v26
    %v39 = vunpack.c.l.b16 %v27
    %v40 = vpack.c.b16 %v37, %v36
    %v41 = vpack.c.b16 %v39, %v38
    %vm44 = vcmask 261120
    %v46 = vsel %vm44, %v23, 0
    %48 = vmatpush.bf16.msra.mxu0 0
    %49 = vmatpush.bf16.msra.mxu0 0
    %50 = vmatpush.bf16.msra.mxu0 0
    %51 = vmatpush.bf16.msra.mxu0 0
    %52 = vmatpush.bf16.msra.mxu0 0
    %53 = vmatpush.bf16.msra.mxu0 0
    %54 = vmatpush.bf16.msra.mxu0 %v41
    %55 = vmatpush.bf16.msra.mxu0 %v40
    %56 = vmatmul.bf16.gmra.mxu0 %v46
    %v57 = vpop.f32.mrf.mxu0
    %v58 = vadd.f32 %v30, %v57
    %v59 = vpop.f32.mrf.mxu0
    %60 = vdwg.mxu0
    %v61 = vmax.f32 %v58, 0.0
    %v62 = vpack.c.bf16 %v61, %v61
    %v63 = vld [vmem:[%s3] sm:$0xf]
    %v64 = vld [vmem:[%s3 + $0x4] sm:$0xf]
    %v65 = vld [vmem:[%s3 + $0x8] sm:$0xf]
    %v66 = vld [vmem:[%s3 + $0xc] sm:$0xf]
    %v67 = vld [vmem:[%s3 + $0x10] sm:$0xf]
    %v68 = vld [vmem:[%s3 + $0x14] sm:$0xf]
    %v69 = vld [vmem:[%s3 + $0x18] sm:$0xf]
    %v70 = vld [vmem:[%s3 + $0x1c] sm:$0xf]
    %v71 = vld [vmem:[%s3 + $0x20] sm:$0xf]
    %v72 = vld [vmem:[%s3 + $0x24] sm:$0xf]
    %v73 = vld [vmem:[%s3 + $0x28] sm:$0xf]
    %v74 = vld [vmem:[%s3 + $0x2c] sm:$0xf]
    %v75 = vld [vmem:[%s3 + $0x30] sm:$0xf]
    %v76 = vld [vmem:[%s3 + $0x34] sm:$0xf]
    %v77 = vld [vmem:[%s3 + $0x38] sm:$0xf]
    %v78 = vld [vmem:[%s3 + $0x3c] sm:$0xf]
    %v79 = vld [vmem:[%s4] sm:$0x1]
    %v81 = vperm.slane %v79, 0
    %v99 = vunpack.c.l.b16 %v63
    %v100 = vunpack.c.l.b16 %v64
    %v101 = vunpack.c.l.b16 %v65
    %v102 = vunpack.c.l.b16 %v66
    %v103 = vunpack.c.l.b16 %v67
    %v104 = vunpack.c.l.b16 %v68
    %v105 = vunpack.c.l.b16 %v69
    %v106 = vunpack.c.l.b16 %v70
    %v107 = vunpack.c.l.b16 %v71
    %v108 = vunpack.c.l.b16 %v72
    %v109 = vunpack.c.l.b16 %v73
    %v110 = vunpack.c.l.b16 %v74
    %v111 = vunpack.c.l.b16 %v75
    %v112 = vunpack.c.l.b16 %v76
    %v113 = vunpack.c.l.b16 %v77
    %v114 = vunpack.c.l.b16 %v78
    %v115 = vpack.c.b16 %v100, %v99
    %v116 = vpack.c.b16 %v102, %v101
    %v117 = vpack.c.b16 %v104, %v103
    %v118 = vpack.c.b16 %v106, %v105
    %v119 = vpack.c.b16 %v108, %v107
    %v120 = vpack.c.b16 %v110, %v109
    %v121 = vpack.c.b16 %v112, %v111
    %v122 = vpack.c.b16 %v114, %v113
    %131 = vmatpush.bf16.msra.mxu0 %v122
    %132 = vmatpush.bf16.msra.mxu0 %v121
    %133 = vmatpush.bf16.msra.mxu0 %v120
    %134 = vmatpush.bf16.msra.mxu0 %v119
    %135 = vmatpush.bf16.msra.mxu0 %v118
    %136 = vmatpush.bf16.msra.mxu0 %v117
    %137 = vmatpush.bf16.msra.mxu0 %v116
    %138 = vmatpush.bf16.msra.mxu0 %v115
    %139 = vmatmul.bf16.gmra.mxu0 %v62
    %v140 = vpop.f32.mrf.mxu0
    %v141 = vadd.f32 %v81, %v140
    %v142 = vpop.f32.mrf.mxu0
    %143 = vdwg.mxu0
    %vm144 = vcmask 80896
    %v145 = vsel %vm144, %v141, -inf
    %146 = vmax.xlane.f32.xlu0 %v145
    %v147 = vpop.xlane.xlu0 %146
    %v148 = vsub.f32 %v141, %v147
    %v149 = vmul.f32 %v148, 1.442695
    %v150 = vpow.pop %v149
    %v151 = vsel %vm144, %v150, 0.0
    %152 = vadd.xlane.f32.xlu0 %v151
    %v153 = vpop.xlane.xlu0 %152
    %v154 = vrcp.pop %v153
    %v155 = vmul.f32 %v153, %v154
    %v156 = vsub.f32 1.0, %v155
    %v157 = vmul.f32 %v154, %v156
    %v158 = vadd.f32 %v154, %v157
    %vm159 = vweird.f32 %v153
    %vm160 = vweird.f32 %v154
    %vm161 = vmor %vm159, %vm160
    %v162 = vsel %vm161, %v154, %v158
    %v163 = vand.u32 2147483647, %v153
    %vm164 = vcmp.eq.f32.partialorder %v163, 8.507059e+37
    %v165 = vand.u32 %v153, 2147483648
    %v166 = vor.u32 1.1754944e-38, %v165
    %v167 = vsel %vm164, %v166, %v162
    %v168 = vmul.f32 %v150, %v167
    %169 = vst.msk [vmem:[#allocation2] sm:$0xff] %vm144, %v168
    // Predicated region
    $region22: #{tpu_custom_call.1} parent=1 // pred_check
      _
    $region23: #{tpu_custom_call.1} parent=1 // pred_check_branch
      %171 = sbr.rel (0) target = $region25
    $region24: #{tpu_custom_call.1} parent=1 // pred_region
      %173 = vsyncadd [#allocation3], 0
      %s175 = sshll.u32 [#allocation2], 4
      %s176 = int_to_ptr.vmem [resolvable:$true] %s175
      %s177 = sshll.u32 %s5, 4
      %s178 = int_to_ptr.hbm [resolvable:$true] %s177
      %180 = dma.vmem_to_hbm [thread:$0]  %s176, 128, %s178, [#allocation3]
    $region25: #{tpu_custom_call.1} parent=1 // pred_fallthru
      _
    // Predicated region
    $region26: #{tpu_custom_call.1} parent=1 // pred_check
      _
    $region27: #{tpu_custom_call.1} parent=1 // pred_check_branch
      %182 = sbr.rel (0) target = $region29
    $region28: #{tpu_custom_call.1} parent=1 // pred_region
      %184 = dma.done [#allocation3], 128
    $region29: #{tpu_custom_call.1} parent=1 // pred_fallthru
      _
    %185 = vsyncpa [#allocation3], 1

</llo_original>
